<compile_context>
chip_gen: v7x
topology: tpu7x:2x2x1
jax: 0.10.0
libtpu: 0.0.40
codegen_flags: <defaults>
</compile_context>

<pallas_src>
import functools

import jax
import jax.numpy as jnp
from jax.experimental import pallas as pl
from jax.experimental.pallas import tpu as pltpu

EPS = 1e-5
LANES = 128


def _pad_up(n, m):
    return ((n + m - 1) // m) * m


def _mlp_kernel(h0p, h1p, outp,
                x_ref, w0_ref, w1_ref, w2_ref, vec_ref,
                o_ref):
    """Fused forward: Linear->ReLU->BN, Linear->ReLU->BN, Linear.

    All feature dims are already lane-padded (multiples of 128). vec_ref packs
    the per-layer bias / gamma / beta rows: [b0,g0,beta0,b1,g1,beta1,b2,pad].
    Padded gamma/beta lanes are zero, so padded feature columns stay exactly 0.
    """
    x = x_ref[...]
    vecs = vec_ref[...]

    b0, g0, beta0 = vecs[0:1, :h0p], vecs[1:2, :h0p], vecs[2:3, :h0p]
    b1, g1, beta1 = vecs[3:4, :h1p], vecs[4:5, :h1p], vecs[5:6, :h1p]
    b2 = vecs[6:7, :outp]

    def bn(h, g, beta):
        # Training-mode BatchNorm1d (biased variance), two-pass form to avoid
        # catastrophic cancellation. rsqrt -> EUP slot (free vs VALU).
        mean = jnp.mean(h, axis=0, keepdims=True)
        d = h - mean
        var = jnp.mean(d * d, axis=0, keepdims=True)
        scale = jax.lax.rsqrt(var + EPS) * g
        return d * scale + beta

    # Block 0: Linear -> ReLU -> BN
    h = jnp.maximum(
        jnp.dot(x, w0_ref[...], preferred_element_type=jnp.float32) + b0, 0.0)
    h = bn(h, g0, beta0)

    # Block 1: Linear -> ReLU -> BN
    h = jnp.maximum(
        jnp.dot(h, w1_ref[...], preferred_element_type=jnp.float32) + b1, 0.0)
    h = bn(h, g1, beta1)

    # Final Linear (lane-dense padded output; real columns sliced outside).
    o_ref[...] = (
        jnp.dot(h, w2_ref[...], preferred_element_type=jnp.float32) + b2
    ).astype(o_ref.dtype)


def prepare_params(params):
    """One-time padding/packing of parameters (hoisted out of the call path).

    Returns (padded_dict, out_dim). padded_dict holds the lane-padded weight
    matrices and the packed (8, pmax) bias/gamma/beta slab.
    """
    in_dim, h0 = params["w0"].shape
    _, h1 = params["w1"].shape
    _, out_dim = params["w2"].shape

    in_p = _pad_up(in_dim, LANES)
    h0p = _pad_up(h0, LANES)
    h1p = _pad_up(h1, LANES)
    outp = _pad_up(out_dim, LANES)
    pmax = max(h0p, h1p, outp)

    f32 = jnp.float32
    w0p = jnp.zeros((in_p, h0p), f32).at[:in_dim, :h0].set(params["w0"])
    w1p = jnp.zeros((h0p, h1p), f32).at[:h0, :h1].set(params["w1"])
    w2p = jnp.zeros((h1p, outp), f32).at[:h1, :out_dim].set(params["w2"])

    # Pack the 7 small vectors into a single sublane-aligned (8, pmax) slab
    # -> 5 operand DMAs per call instead of 11.
    vecs = jnp.zeros((8, pmax), f32)
    vecs = vecs.at[0, :h0].set(params["b0"].reshape(-1))
    vecs = vecs.at[1, :h0].set(params["g0"].reshape(-1))
    vecs = vecs.at[2, :h0].set(params["beta0"].reshape(-1))
    vecs = vecs.at[3, :h1].set(params["b1"].reshape(-1))
    vecs = vecs.at[4, :h1].set(params["g1"].reshape(-1))
    vecs = vecs.at[5, :h1].set(params["beta1"].reshape(-1))
    vecs = vecs.at[6, :out_dim].set(params["b2"].reshape(-1))

    padded = {"w0p": w0p, "w1p": w1p, "w2p": w2p, "vecs": vecs}
    # Materialize now so nothing is (re)computed on the per-call path.
    padded = jax.tree_util.tree_map(jax.block_until_ready, padded)
    return padded, int(out_dim)


@functools.partial(jax.jit, static_argnames=("out_dim",))
def mlp_forward(x, padded, *, out_dim):
    """x: [B, input_dim] float32. padded: output of prepare_params."""
    B, in_dim = x.shape
    w0p, w1p, w2p, vecs = padded["w0p"], padded["w1p"], padded["w2p"], padded["vecs"]
    in_p, h0p = w0p.shape
    h1p = w1p.shape[1]
    outp = w2p.shape[1]

    # Only the activation is padded per call; it fuses under jit with the
    # pallas_call and the output slice.
    xp = jnp.zeros((B, in_p), jnp.float32).at[:, :in_dim].set(
        x.astype(jnp.float32))

    inputs = (xp, w0p, w1p, w2p, vecs)

    # Tiny problem -> one grid step, every (padded) operand fully resident in VMEM.
    def full_spec(shape):
        return pl.BlockSpec(shape, lambda: tuple(0 for _ in shape))

    out_padded = pl.pallas_call(
        functools.partial(_mlp_kernel, h0p, h1p, outp),
        out_shape=jax.ShapeDtypeStruct((B, outp), jnp.float32),
        grid=(),
        in_specs=[full_spec(a.shape) for a in inputs],
        out_specs=full_spec((B, outp)),
        compiler_params=pltpu.CompilerParams(vmem_limit_bytes=32 * 1024 * 1024),
    )(*inputs)

    return out_padded[:, :out_dim]


def init_params(key, input_dim, output_dim, layers):
    """Deterministic parameter init mirroring the module's shapes.

    Linear weights are created as [in, out] (transposed w.r.t. PyTorch storage),
    biases / BN params as [1, n].
    """
    dims = [input_dim] + list(layers) + [output_dim]
    params = {}
    keys = jax.random.split(key, 2 * (len(dims) - 1))
    for i in range(len(dims) - 1):
        fan_in, fan_out = dims[i], dims[i + 1]
        bound = 1.0 / jnp.sqrt(fan_in)
        w = jax.random.uniform(keys[2 * i], (fan_in, fan_out),
                               minval=-bound, maxval=bound, dtype=jnp.float32)
        b = jax.random.uniform(keys[2 * i + 1], (1, fan_out),
                               minval=-bound, maxval=bound, dtype=jnp.float32)
        params[f"w{i}"] = w
        params[f"b{i}"] = b
        if i < len(layers):  # hidden layers carry a BatchNorm1d
            params[f"g{i}"] = (1.0 + 0.1 * jnp.arange(fan_out, dtype=jnp.float32)
                               .reshape(1, -1) / fan_out)
            params[f"beta{i}"] = (0.05 * jnp.arange(fan_out, dtype=jnp.float32)
                                  .reshape(1, -1) / fan_out)
    return params


def mlp_reference(x, params):
    """Pure-JAX reference (same math) for a sanity check."""
    def bn(h, g, beta):
        mean = jnp.mean(h, axis=0, keepdims=True)
        var = jnp.mean((h - mean) ** 2, axis=0, keepdims=True)
        return (h - mean) / jnp.sqrt(var + EPS) * g + beta

    h = jnp.maximum(x @ params["w0"] + params["b0"], 0.0)
    h = bn(h, params["g0"], params["beta0"])
    h = jnp.maximum(h @ params["w1"] + params["b1"], 0.0)
    h = bn(h, params["g1"], params["beta1"])
    return h @ params["w2"] + params["b2"]


if __name__ == "__main__":
    # Small MLP: input_dim=32, layers=[64, 32], output_dim=16, batch=8.
    input_dim, output_dim, layers = 32, 16, [64, 32]
    batch = 8

    key = jax.random.PRNGKey(0)
    k_x, k_p = jax.random.split(key)
    x = jax.random.normal(k_x, (batch, input_dim), dtype=jnp.float32)
    params = init_params(k_p, input_dim, output_dim, layers)

    # One-time parameter padding/packing (hoisted out of the call path).
    padded, out_dim = prepare_params(params)

    out = mlp_forward(x, padded, out_dim=out_dim)
    out = jax.block_until_ready(out)

    ref = mlp_reference(x, params)
    assert out.shape == (batch, output_dim)
    assert jnp.allclose(out, ref, atol=1e-4, rtol=1e-4), "mismatch vs reference"

    print("KERNEL_OK")
</pallas_src>

<mosaic_0001>
module attributes {stable_mosaic.version = 11 : i64} {
  func.func @_mlp_kernel(%arg0: memref<8x128xf32, #tpu.memory_space<vmem>>, %arg1: memref<128x128xf32, #tpu.memory_space<vmem>>, %arg2: memref<128x128xf32, #tpu.memory_space<vmem>>, %arg3: memref<128x128xf32, #tpu.memory_space<vmem>>, %arg4: memref<8x128xf32, #tpu.memory_space<vmem>>, %arg5: memref<8x128xf32, #tpu.memory_space<vmem>>) attributes {dimension_semantics = [], scalar_prefetch = 0 : i64, scratch_operands = 0 : i64, tpu.core_type = #tpu.core_type<tc>} {
    %c0 = arith.constant 0 : index
    %c0_0 = arith.constant 0 : index
    %0 = vector.load %arg0[%c0, %c0_0] : memref<8x128xf32, #tpu.memory_space<vmem>>, vector<8x128xf32>
    %c0_1 = arith.constant 0 : index
    %c0_2 = arith.constant 0 : index
    %1 = vector.load %arg4[%c0_1, %c0_2] : memref<8x128xf32, #tpu.memory_space<vmem>>, vector<8x128xf32>
    %2 = vector.extract_strided_slice %1 {offsets = [0, 0], sizes = [1, 128], strides = [1, 1]} : vector<8x128xf32> to vector<1x128xf32>
    %3 = vector.extract_strided_slice %1 {offsets = [1, 0], sizes = [1, 128], strides = [1, 1]} : vector<8x128xf32> to vector<1x128xf32>
    %4 = vector.extract_strided_slice %1 {offsets = [2, 0], sizes = [1, 128], strides = [1, 1]} : vector<8x128xf32> to vector<1x128xf32>
    %5 = vector.extract_strided_slice %1 {offsets = [3, 0], sizes = [1, 128], strides = [1, 1]} : vector<8x128xf32> to vector<1x128xf32>
    %6 = vector.extract_strided_slice %1 {offsets = [4, 0], sizes = [1, 128], strides = [1, 1]} : vector<8x128xf32> to vector<1x128xf32>
    %7 = vector.extract_strided_slice %1 {offsets = [5, 0], sizes = [1, 128], strides = [1, 1]} : vector<8x128xf32> to vector<1x128xf32>
    %8 = vector.extract_strided_slice %1 {offsets = [6, 0], sizes = [1, 128], strides = [1, 1]} : vector<8x128xf32> to vector<1x128xf32>
    %c0_3 = arith.constant 0 : index
    %c0_4 = arith.constant 0 : index
    %9 = vector.load %arg1[%c0_3, %c0_4] : memref<128x128xf32, #tpu.memory_space<vmem>>, vector<128x128xf32>
    %cst = arith.constant dense<0.000000e+00> : vector<8x128xf32>
    %10 = tpu.matmul %0, %9, %cst {dimension_numbers = #tpu.dot_dimension_numbers<[1], [0], [0], [1], [0, 0, 1, 1], [], []>} : vector<8x128xf32>, vector<128x128xf32>, vector<8x128xf32> -> vector<8x128xf32>
    %11 = vector.broadcast %2 : vector<1x128xf32> to vector<8x128xf32>
    %12 = arith.addf %10, %11 : vector<8x128xf32>
    %cst_5 = arith.constant 0.000000e+00 : f32
    %13 = vector.broadcast %cst_5 : f32 to vector<8x128xf32>
    %14 = arith.maximumf %12, %13 : vector<8x128xf32>
    %cst_6 = arith.constant dense<0.000000e+00> : vector<128xf32>
    %15 = vector.multi_reduction <add>, %14, %cst_6 [0] : vector<8x128xf32> to vector<128xf32>
    %16 = vector.shape_cast %15 : vector<128xf32> to vector<1x128xf32>
    %cst_7 = arith.constant 8.000000e+00 : f32
    %17 = vector.broadcast %cst_7 : f32 to vector<1x128xf32>
    %18 = arith.divf %16, %17 : vector<1x128xf32>
    %19 = vector.broadcast %18 : vector<1x128xf32> to vector<8x128xf32>
    %20 = arith.subf %14, %19 : vector<8x128xf32>
    %21 = arith.mulf %20, %20 : vector<8x128xf32>
    %cst_8 = arith.constant dense<0.000000e+00> : vector<128xf32>
    %22 = vector.multi_reduction <add>, %21, %cst_8 [0] : vector<8x128xf32> to vector<128xf32>
    %23 = vector.shape_cast %22 : vector<128xf32> to vector<1x128xf32>
    %cst_9 = arith.constant 8.000000e+00 : f32
    %24 = vector.broadcast %cst_9 : f32 to vector<1x128xf32>
    %25 = arith.divf %23, %24 : vector<1x128xf32>
    %cst_10 = arith.constant 9.99999974E-6 : f32
    %26 = vector.broadcast %cst_10 : f32 to vector<1x128xf32>
    %27 = arith.addf %25, %26 : vector<1x128xf32>
    %28 = math.rsqrt %27 : vector<1x128xf32>
    %29 = arith.mulf %28, %3 : vector<1x128xf32>
    %30 = vector.broadcast %29 : vector<1x128xf32> to vector<8x128xf32>
    %31 = arith.mulf %20, %30 : vector<8x128xf32>
    %32 = vector.broadcast %4 : vector<1x128xf32> to vector<8x128xf32>
    %33 = arith.addf %31, %32 : vector<8x128xf32>
    %c0_11 = arith.constant 0 : index
    %c0_12 = arith.constant 0 : index
    %34 = vector.load %arg2[%c0_11, %c0_12] : memref<128x128xf32, #tpu.memory_space<vmem>>, vector<128x128xf32>
    %cst_13 = arith.constant dense<0.000000e+00> : vector<8x128xf32>
    %35 = tpu.matmul %33, %34, %cst_13 {dimension_numbers = #tpu.dot_dimension_numbers<[1], [0], [0], [1], [0, 0, 1, 1], [], []>} : vector<8x128xf32>, vector<128x128xf32>, vector<8x128xf32> -> vector<8x128xf32>
    %36 = vector.broadcast %5 : vector<1x128xf32> to vector<8x128xf32>
    %37 = arith.addf %35, %36 : vector<8x128xf32>
    %cst_14 = arith.constant 0.000000e+00 : f32
    %38 = vector.broadcast %cst_14 : f32 to vector<8x128xf32>
    %39 = arith.maximumf %37, %38 : vector<8x128xf32>
    %cst_15 = arith.constant dense<0.000000e+00> : vector<128xf32>
    %40 = vector.multi_reduction <add>, %39, %cst_15 [0] : vector<8x128xf32> to vector<128xf32>
    %41 = vector.shape_cast %40 : vector<128xf32> to vector<1x128xf32>
    %cst_16 = arith.constant 8.000000e+00 : f32
    %42 = vector.broadcast %cst_16 : f32 to vector<1x128xf32>
    %43 = arith.divf %41, %42 : vector<1x128xf32>
    %44 = vector.broadcast %43 : vector<1x128xf32> to vector<8x128xf32>
    %45 = arith.subf %39, %44 : vector<8x128xf32>
    %46 = arith.mulf %45, %45 : vector<8x128xf32>
    %cst_17 = arith.constant dense<0.000000e+00> : vector<128xf32>
    %47 = vector.multi_reduction <add>, %46, %cst_17 [0] : vector<8x128xf32> to vector<128xf32>
    %48 = vector.shape_cast %47 : vector<128xf32> to vector<1x128xf32>
    %cst_18 = arith.constant 8.000000e+00 : f32
    %49 = vector.broadcast %cst_18 : f32 to vector<1x128xf32>
    %50 = arith.divf %48, %49 : vector<1x128xf32>
    %cst_19 = arith.constant 9.99999974E-6 : f32
    %51 = vector.broadcast %cst_19 : f32 to vector<1x128xf32>
    %52 = arith.addf %50, %51 : vector<1x128xf32>
    %53 = math.rsqrt %52 : vector<1x128xf32>
    %54 = arith.mulf %53, %6 : vector<1x128xf32>
    %55 = vector.broadcast %54 : vector<1x128xf32> to vector<8x128xf32>
    %56 = arith.mulf %45, %55 : vector<8x128xf32>
    %57 = vector.broadcast %7 : vector<1x128xf32> to vector<8x128xf32>
    %58 = arith.addf %56, %57 : vector<8x128xf32>
    %c0_20 = arith.constant 0 : index
    %c0_21 = arith.constant 0 : index
    %59 = vector.load %arg3[%c0_20, %c0_21] : memref<128x128xf32, #tpu.memory_space<vmem>>, vector<128x128xf32>
    %cst_22 = arith.constant dense<0.000000e+00> : vector<8x128xf32>
    %60 = tpu.matmul %58, %59, %cst_22 {dimension_numbers = #tpu.dot_dimension_numbers<[1], [0], [0], [1], [0, 0, 1, 1], [], []>} : vector<8x128xf32>, vector<128x128xf32>, vector<8x128xf32> -> vector<8x128xf32>
    %61 = vector.broadcast %8 : vector<1x128xf32> to vector<8x128xf32>
    %62 = arith.addf %60, %61 : vector<8x128xf32>
    %c0_23 = arith.constant 0 : index
    %c0_24 = arith.constant 0 : index
    %63 = vector.load %arg5[%c0_23, %c0_24] : memref<8x128xf32, #tpu.memory_space<vmem>>, vector<8x128xf32>
    tpu.vector_store %arg5[%c0_23, %c0_24], %62 {strides = array<i32>} : memref<8x128xf32, #tpu.memory_space<vmem>>, vector<8x128xf32>,
    return
  }
}

</mosaic_0001>

<llo_original>
// kernel: mlp_forward.1
$region0: #{mlp_forward.1}
  #allocation0 [shape = 'u32[]', space=smem, size = 0x4, offset = 0x4, fixed_abs, tag = 'smem constant byte address 0x4 - core index']
  #allocation1 [shape = 'u32[144,128]{1,0:T(1,128)}', space=vmem, size = 0x12000, scoped, tag = 'internal scratch']
  %s0 = inlined_call_operand.vmem [shape: f32[8,128], index: 0, kind: input, shape index: {}]
  %s1 = inlined_call_operand.hbm [shape: f32[128,128], index: 1, kind: input, shape index: {}]
  %s2 = inlined_call_operand.hbm [shape: f32[128,128], index: 2, kind: input, shape index: {}]
  %s3 = inlined_call_operand.hbm [shape: f32[128,128], index: 3, kind: input, shape index: {}]
  %s4 = inlined_call_operand.vmem [shape: f32[8,128], index: 4, kind: input, shape index: {}]
  %s5 = inlined_call_operand.hbm [shape: f32[8,128], index: 5, kind: output, shape index: {}]
  %s6 = sld [smem:[#allocation0]]
  $region42: #{mlp_forward.1} parent=0
    _
  %s8 = ssub.s32 1, %s6
  %s9 = scalar_select 0, %s8, %s6
  $region1: #{mlp_forward.1} parent=0
    #allocation2 [shape = 'u8[65536]{0}', space=vmem, size = 0x10000, scoped, tag = 'input window, operand 1, single buffered']
    #allocation3 [shape = 's32[1]{0}', space=sflag, size = 0x4, scoped, tag = 'scoped memory for mlp_forward.1']
    #allocation4 [shape = 's32[1]{0}', space=sflag, size = 0x4, scoped, tag = 'scoped memory for mlp_forward.1']
    #allocation5 [shape = 'u8[65536]{0}', space=vmem, size = 0x10000, scoped, tag = 'input window, operand 2, single buffered']
    #allocation6 [shape = 's32[1]{0}', space=sflag, size = 0x4, scoped, tag = 'scoped memory for mlp_forward.1']
    #allocation7 [shape = 'u8[65536]{0}', space=vmem, size = 0x10000, scoped, tag = 'input window, operand 3, single buffered']
    #allocation8 [shape = 'u8[4096]{0}', space=vmem, size = 0x1000, scoped, tag = 'output window, operand 0, single buffered']
    %10 = vsyncpa [#allocation3], 0
    %11 = vsyncpa [#allocation6], 0
    %12 = vsyncpa [#allocation4], 0
    // Predicated region
    $region2: #{mlp_forward.1} parent=1 // pred_check
      _
    $region3: #{mlp_forward.1} parent=1 // pred_check_branch
      %14 = sbr.rel (0) target = $region5
    $region4: #{mlp_forward.1} parent=1 // pred_region
      _
    $region5: #{mlp_forward.1} parent=1 // pred_fallthru
      _
    // Predicated region
    $region6: #{mlp_forward.1} parent=1 // pred_check
      _
    $region7: #{mlp_forward.1} parent=1 // pred_check_branch
      %16 = sbr.rel (0) target = $region9
    $region8: #{mlp_forward.1} parent=1 // pred_region
      %s18 = ssub.s32 2048, 2048
      %19 = vsyncadd [#allocation3], %s18
      %s20 = sshll.u32 [#allocation2], 4
      %s21 = int_to_ptr.vmem [resolvable:$true] %s20
      %26 = dma.hbm_to_vmem [thread:$0]  %s1, 2048, %s21, [#allocation3], 128, 128, 8
    $region9: #{mlp_forward.1} parent=1 // pred_fallthru
      _
    // Predicated region
    $region10: #{mlp_forward.1} parent=1 // pred_check
      _
    $region11: #{mlp_forward.1} parent=1 // pred_check_branch
      %28 = sbr.rel (0) target = $region13
    $region12: #{mlp_forward.1} parent=1 // pred_region
      %s30 = ssub.s32 2048, 2048
      %31 = vsyncadd [#allocation6], %s30
      %s32 = sshll.u32 [#allocation5], 4
      %s33 = int_to_ptr.vmem [resolvable:$true] %s32
      %38 = dma.hbm_to_vmem [thread:$0]  %s2, 2048, %s33, [#allocation6], 128, 128, 8
    $region13: #{mlp_forward.1} parent=1 // pred_fallthru
      _
    // Predicated region
    $region14: #{mlp_forward.1} parent=1 // pred_check
      _
    $region15: #{mlp_forward.1} parent=1 // pred_check_branch
      %40 = sbr.rel (0) target = $region17
    $region16: #{mlp_forward.1} parent=1 // pred_region
      %s42 = ssub.s32 2048, 2048
      %43 = vsyncadd [#allocation6], %s42
      %s44 = sshll.u32 [#allocation7], 4
      %s45 = int_to_ptr.vmem [resolvable:$true] %s44
      %50 = dma.hbm_to_vmem [thread:$0]  %s3, 2048, %s45, [#allocation6], 128, 128, 8
    $region17: #{mlp_forward.1} parent=1 // pred_fallthru
      _
    // Predicated region
    $region18: #{mlp_forward.1} parent=1 // pred_check
      _
    $region19: #{mlp_forward.1} parent=1 // pred_check_branch
      %52 = sbr.rel (0) target = $region21
    $region20: #{mlp_forward.1} parent=1 // pred_region
      _
    $region21: #{mlp_forward.1} parent=1 // pred_fallthru
      _
    // Predicated region
    $region22: #{mlp_forward.1} parent=1 // pred_check
      _
    $region23: #{mlp_forward.1} parent=1 // pred_check_branch
      %54 = sbr.rel (0) target = $region25
    $region24: #{mlp_forward.1} parent=1 // pred_region
      %55 = dma.done [#allocation3], 2048
    $region25: #{mlp_forward.1} parent=1 // pred_fallthru
      _
    // Predicated region
    $region26: #{mlp_forward.1} parent=1 // pred_check
      _
    $region27: #{mlp_forward.1} parent=1 // pred_check_branch
      %57 = sbr.rel (0) target = $region29
    $region28: #{mlp_forward.1} parent=1 // pred_region
      %58 = dma.done [#allocation6], 2048
    $region29: #{mlp_forward.1} parent=1 // pred_fallthru
      _
    // Predicated region
    $region30: #{mlp_forward.1} parent=1 // pred_check
      _
    $region31: #{mlp_forward.1} parent=1 // pred_check_branch
      %60 = sbr.rel (0) target = $region33
    $region32: #{mlp_forward.1} parent=1 // pred_region
      %61 = dma.done [#allocation6], 2048
    $region33: #{mlp_forward.1} parent=1 // pred_fallthru
      _
    %v62 = vld [vmem:[%s0] sm:$0xff]
    %v63 = vld [vmem:[%s4] sm:$0xff]
    %v64 = vld [vmem:[#allocation2] sm:$0xff]
    %v65 = vld [vmem:[#allocation2 + $0x8] sm:$0xff]
    %v66 = vld [vmem:[#allocation2 + $0x10] sm:$0xff]
    %v67 = vld [vmem:[#allocation2 + $0x18] sm:$0xff]
    %v68 = vld [vmem:[#allocation2 + $0x20] sm:$0xff]
    %v69 = vld [vmem:[#allocation2 + $0x28] sm:$0xff]
    %v70 = vld [vmem:[#allocation2 + $0x30] sm:$0xff]
    %v71 = vld [vmem:[#allocation2 + $0x38] sm:$0xff]
    %v72 = vld [vmem:[#allocation2 + $0x40] sm:$0xff]
    %v73 = vld [vmem:[#allocation2 + $0x48] sm:$0xff]
    %v74 = vld [vmem:[#allocation2 + $0x50] sm:$0xff]
    %v75 = vld [vmem:[#allocation2 + $0x58] sm:$0xff]
    %v76 = vld [vmem:[#allocation2 + $0x60] sm:$0xff]
    %v77 = vld [vmem:[#allocation2 + $0x68] sm:$0xff]
    %v78 = vld [vmem:[#allocation2 + $0x70] sm:$0xff]
    %v79 = vld [vmem:[#allocation2 + $0x78] sm:$0xff]
    %v80 = vlaneseq
    %v81 = vshrl.u32 %v80, 7
    %v82 = vsub.s32 0, %v81
    %v83 = vrot.slane %v63, %v82
    %84 = vmatprep.subr.mxu0 0.0
    %85 = vmatpush1.msra.mxu0 %v64
    %86 = vmatprep.subr.mxu0 0.0
    %87 = vmatpush1.msra.mxu0 %v65
    %88 = vmatprep.subr.mxu0 0.0
    %89 = vmatpush1.msra.mxu0 %v66
    %90 = vmatprep.subr.mxu0 0.0
    %91 = vmatpush1.msra.mxu0 %v67
    %92 = vmatprep.subr.mxu0 0.0
    %93 = vmatpush1.msra.mxu0 %v68
    %94 = vmatprep.subr.mxu0 0.0
    %95 = vmatpush1.msra.mxu0 %v69
    %96 = vmatprep.subr.mxu0 0.0
    %97 = vmatpush1.msra.mxu0 %v70
    %98 = vmatprep.subr.mxu0 0.0
    %99 = vmatpush1.msra.mxu0 %v71
    %100 = vmatprep.subr.mxu0 0.0
    %101 = vmatpush1.msra.mxu0 %v72
    %102 = vmatprep.subr.mxu0 0.0
    %103 = vmatpush1.msra.mxu0 %v73
    %104 = vmatprep.subr.mxu0 0.0
    %105 = vmatpush1.msra.mxu0 %v74
    %106 = vmatprep.subr.mxu0 0.0
    %107 = vmatpush1.msra.mxu0 %v75
    %108 = vmatprep.subr.mxu0 0.0
    %109 = vmatpush1.msra.mxu0 %v76
    %110 = vmatprep.subr.mxu0 0.0
    %111 = vmatpush1.msra.mxu0 %v77
    %112 = vmatprep.subr.mxu0 0.0
    %113 = vmatpush1.msra.mxu0 %v78
    %114 = vmatprep.subr.mxu0 0.0
    %115 = vmatpush1.msra.mxu0 %v79
    %116 = vmatprep.subr.mxu0 0.0
    %117 = vmatpush1.msra.mxu0 0.0
    %118 = vmatprep.subr.mxu0 0.0
    %119 = vmatpush1.msra.mxu0 0.0
    %120 = vmatprep.subr.mxu0 0.0
    %121 = vmatpush1.msra.mxu0 0.0
    %122 = vmatprep.subr.mxu0 0.0
    %123 = vmatpush1.msra.mxu0 0.0
    %124 = vmatprep.subr.mxu0 0.0
    %125 = vmatpush1.msra.mxu0 0.0
    %126 = vmatprep.subr.mxu0 0.0
    %127 = vmatpush1.msra.mxu0 0.0
    %128 = vmatprep.subr.mxu0 0.0
    %129 = vmatpush1.msra.mxu0 0.0
    %130 = vmatprep.subr.mxu0 0.0
    %131 = vmatpush1.msra.mxu0 0.0
    %132 = vmatprep.subr.mxu0 0.0
    %133 = vmatpush1.msra.mxu0 0.0
    %134 = vmatprep.subr.mxu0 0.0
    %135 = vmatpush1.msra.mxu0 0.0
    %136 = vmatprep.subr.mxu0 0.0
    %137 = vmatpush1.msra.mxu0 0.0
    %138 = vmatprep.subr.mxu0 0.0
    %139 = vmatpush1.msra.mxu0 0.0
    %140 = vmatprep.subr.mxu0 0.0
    %141 = vmatpush1.msra.mxu0 0.0
    %142 = vmatprep.subr.mxu0 0.0
    %143 = vmatpush1.msra.mxu0 0.0
    %144 = vmatprep.subr.mxu0 0.0
    %145 = vmatpush1.msra.mxu0 0.0
    %146 = vmatprep.subr.mxu0 0.0
    %147 = vmatpush1.msra.mxu0 0.0
    %148 = vmatprep.mubr.f32.mxu0 0.0
    %149 = vmatmul.mubr.f32.gmra.mrb[0].mxu0 %v62
    %v150 = vpop.f32.mrb[0].mxu0
    %v151 = vadd.f32 %v83, %v150
    %v152 = vpop.f32.mrb[0].mxu0
    %153 = vdwg.mxu0
    %v154 = vmax.f32 %v151, 0.0
    %v155 = vrot.slane %v154, 4
    %v156 = vadd.f32 %v154, %v155
    %v157 = vrot.slane %v156, 2
    %v158 = vadd.f32 %v156, %v157
    %v159 = vrot.slane %v158, 1
    %v160 = vadd.f32 %v158, %v159
    %v161 = vrcp.pop 8.0
    %v162 = vmul.f32 %v160, %v161
    %v163 = vsub.f32 %v154, %v162
    %v164 = vmul.f32 %v163, %v163
    %v165 = vrot.slane %v164, 4
    %v166 = vadd.f32 %v164, %v165
    %v167 = vrot.slane %v166, 2
    %v168 = vadd.f32 %v166, %v167
    %v169 = vrot.slane %v168, 1
    %v170 = vadd.f32 %v168, %v169
    %v171 = vmul.f32 %v170, %v161
    %v172 = vadd.f32 %v171, 1e-05
    %v173 = vrsqrt.pop %v172
    %v174 = vmul.f32 %v173, %v63
    %v175 = vlaneseq
    %v176 = vshrl.u32 %v175, 7
    %v177 = vsub.s32 1, %v176
    %v178 = vrot.slane %v174, %v177
    %v179 = vmul.f32 %v163, %v178
    %v180 = vlaneseq
    %v181 = vshrl.u32 %v180, 7
    %v182 = vsub.s32 2, %v181
    %v183 = vrot.slane %v63, %v182
    %v184 = vadd.f32 %v179, %v183
    %v185 = vld [vmem:[#allocation5] sm:$0xff]
    %v186 = vld [vmem:[#allocation5 + $0x8] sm:$0xff]
    %v187 = vld [vmem:[#allocation5 + $0x10] sm:$0xff]
    %v188 = vld [vmem:[#allocation5 + $0x18] sm:$0xff]
    %v189 = vld [vmem:[#allocation5 + $0x20] sm:$0xff]
    %v190 = vld [vmem:[#allocation5 + $0x28] sm:$0xff]
    %v191 = vld [vmem:[#allocation5 + $0x30] sm:$0xff]
    %v192 = vld [vmem:[#allocation5 + $0x38] sm:$0xff]
    %v193 = vld [vmem:[#allocation5 + $0x40] sm:$0xff]
    %v194 = vld [vmem:[#allocation5 + $0x48] sm:$0xff]
    %v195 = vld [vmem:[#allocation5 + $0x50] sm:$0xff]
    %v196 = vld [vmem:[#allocation5 + $0x58] sm:$0xff]
    %v197 = vld [vmem:[#allocation5 + $0x60] sm:$0xff]
    %v198 = vld [vmem:[#allocation5 + $0x68] sm:$0xff]
    %v199 = vld [vmem:[#allocation5 + $0x70] sm:$0xff]
    %v200 = vld [vmem:[#allocation5 + $0x78] sm:$0xff]
    %v201 = vlaneseq
    %v202 = vshrl.u32 %v201, 7
    %v203 = vsub.s32 3, %v202
    %v204 = vrot.slane %v63, %v203
    %205 = vmatprep.subr.mxu0 0.0
    %206 = vmatpush1.msra.mxu0 %v185
    %207 = vmatprep.subr.mxu0 0.0
    %208 = vmatpush1.msra.mxu0 %v186
    %209 = vmatprep.subr.mxu0 0.0
    %210 = vmatpush1.msra.mxu0 %v187
    %211 = vmatprep.subr.mxu0 0.0
    %212 = vmatpush1.msra.mxu0 %v188
    %213 = vmatprep.subr.mxu0 0.0
    %214 = vmatpush1.msra.mxu0 %v189
    %215 = vmatprep.subr.mxu0 0.0
    %216 = vmatpush1.msra.mxu0 %v190
    %217 = vmatprep.subr.mxu0 0.0
    %218 = vmatpush1.msra.mxu0 %v191
    %219 = vmatprep.subr.mxu0 0.0
    %220 = vmatpush1.msra.mxu0 %v192
    %221 = vmatprep.subr.mxu0 0.0
    %222 = vmatpush1.msra.mxu0 %v193
    %223 = vmatprep.subr.mxu0 0.0
    %224 = vmatpush1.msra.mxu0 %v194
    %225 = vmatprep.subr.mxu0 0.0
    %226 = vmatpush1.msra.mxu0 %v195
    %227 = vmatprep.subr.mxu0 0.0
    %228 = vmatpush1.msra.mxu0 %v196
    %229 = vmatprep.subr.mxu0 0.0
    %230 = vmatpush1.msra.mxu0 %v197
    %231 = vmatprep.subr.mxu0 0.0
    %232 = vmatpush1.msra.mxu0 %v198
    %233 = vmatprep.subr.mxu0 0.0
    %234 = vmatpush1.msra.mxu0 %v199
    %235 = vmatprep.subr.mxu0 0.0
    %236 = vmatpush1.msra.mxu0 %v200
    %237 = vmatprep.subr.mxu0 0.0
    %238 = vmatpush1.msra.mxu0 0.0
    %239 = vmatprep.subr.mxu0 0.0
    %240 = vmatpush1.msra.mxu0 0.0
    %241 = vmatprep.subr.mxu0 0.0
    %242 = vmatpush1.msra.mxu0 0.0
    %243 = vmatprep.subr.mxu0 0.0
    %244 = vmatpush1.msra.mxu0 0.0
    %245 = vmatprep.subr.mxu0 0.0
    %246 = vmatpush1.msra.mxu0 0.0
    %247 = vmatprep.subr.mxu0 0.0
    %248 = vmatpush1.msra.mxu0 0.0
    %249 = vmatprep.subr.mxu0 0.0
    %250 = vmatpush1.msra.mxu0 0.0
    %251 = vmatprep.subr.mxu0 0.0
    %252 = vmatpush1.msra.mxu0 0.0
    %253 = vmatprep.subr.mxu0 0.0
    %254 = vmatpush1.msra.mxu0 0.0
    %255 = vmatprep.subr.mxu0 0.0
    %256 = vmatpush1.msra.mxu0 0.0
    %257 = vmatprep.subr.mxu0 0.0
    %258 = vmatpush1.msra.mxu0 0.0
    %259 = vmatprep.subr.mxu0 0.0
    %260 = vmatpush1.msra.mxu0 0.0
    %261 = vmatprep.subr.mxu0 0.0
    %262 = vmatpush1.msra.mxu0 0.0
    %263 = vmatprep.subr.mxu0 0.0
    %264 = vmatpush1.msra.mxu0 0.0
    %265 = vmatprep.subr.mxu0 0.0
    %266 = vmatpush1.msra.mxu0 0.0
    %267 = vmatprep.subr.mxu0 0.0
    %268 = vmatpush1.msra.mxu0 0.0
    %269 = vmatprep.mubr.f32.mxu0 0.0
    %270 = vmatmul.mubr.f32.gmra.mrb[0].mxu0 %v184
    %v271 = vpop.f32.mrb[0].mxu0
    %v272 = vadd.f32 %v204, %v271
    %v273 = vpop.f32.mrb[0].mxu0
    %274 = vdwg.mxu0
    %v275 = vmax.f32 %v272, 0.0
    %v276 = vrot.slane %v275, 4
    %v277 = vadd.f32 %v275, %v276
    %v278 = vrot.slane %v277, 2
    %v279 = vadd.f32 %v277, %v278
    %v280 = vrot.slane %v279, 1
    %v281 = vadd.f32 %v279, %v280
    %v282 = vmul.f32 %v281, %v161
    %v283 = vsub.f32 %v275, %v282
    %v284 = vmul.f32 %v283, %v283
    %v285 = vrot.slane %v284, 4
    %v286 = vadd.f32 %v284, %v285
    %v287 = vrot.slane %v286, 2
    %v288 = vadd.f32 %v286, %v287
    %v289 = vrot.slane %v288, 1
    %v290 = vadd.f32 %v288, %v289
    %v291 = vmul.f32 %v290, %v161
    %v292 = vadd.f32 %v291, 1e-05
    %v293 = vrsqrt.pop %v292
    %v294 = vmul.f32 %v293, %v63
    %v295 = vlaneseq
    %v296 = vshrl.u32 %v295, 7
    %v297 = vsub.s32 4, %v296
    %v298 = vrot.slane %v294, %v297
    %v299 = vmul.f32 %v283, %v298
    %v300 = vlaneseq
    %v301 = vshrl.u32 %v300, 7
    %v302 = vsub.s32 5, %v301
    %v303 = vrot.slane %v63, %v302
    %v304 = vadd.f32 %v299, %v303
    %v305 = vld [vmem:[#allocation7] sm:$0xff]
    %v306 = vld [vmem:[#allocation7 + $0x8] sm:$0xff]
    %v307 = vld [vmem:[#allocation7 + $0x10] sm:$0xff]
    %v308 = vld [vmem:[#allocation7 + $0x18] sm:$0xff]
    %v309 = vld [vmem:[#allocation7 + $0x20] sm:$0xff]
    %v310 = vld [vmem:[#allocation7 + $0x28] sm:$0xff]
    %v311 = vld [vmem:[#allocation7 + $0x30] sm:$0xff]
    %v312 = vld [vmem:[#allocation7 + $0x38] sm:$0xff]
    %v313 = vld [vmem:[#allocation7 + $0x40] sm:$0xff]
    %v314 = vld [vmem:[#allocation7 + $0x48] sm:$0xff]
    %v315 = vld [vmem:[#allocation7 + $0x50] sm:$0xff]
    %v316 = vld [vmem:[#allocation7 + $0x58] sm:$0xff]
    %v317 = vld [vmem:[#allocation7 + $0x60] sm:$0xff]
    %v318 = vld [vmem:[#allocation7 + $0x68] sm:$0xff]
    %v319 = vld [vmem:[#allocation7 + $0x70] sm:$0xff]
    %v320 = vld [vmem:[#allocation7 + $0x78] sm:$0xff]
    %v321 = vlaneseq
    %v322 = vshrl.u32 %v321, 7
    %v323 = vsub.s32 6, %v322
    %v324 = vrot.slane %v63, %v323
    %325 = vmatprep.subr.mxu0 0.0
    %326 = vmatpush1.msra.mxu0 %v305
    %327 = vmatprep.subr.mxu0 0.0
    %328 = vmatpush1.msra.mxu0 %v306
    %329 = vmatprep.subr.mxu0 0.0
    %330 = vmatpush1.msra.mxu0 %v307
    %331 = vmatprep.subr.mxu0 0.0
    %332 = vmatpush1.msra.mxu0 %v308
    %333 = vmatprep.subr.mxu0 0.0
    %334 = vmatpush1.msra.mxu0 %v309
    %335 = vmatprep.subr.mxu0 0.0
    %336 = vmatpush1.msra.mxu0 %v310
    %337 = vmatprep.subr.mxu0 0.0
    %338 = vmatpush1.msra.mxu0 %v311
    %339 = vmatprep.subr.mxu0 0.0
    %340 = vmatpush1.msra.mxu0 %v312
    %341 = vmatprep.subr.mxu0 0.0
    %342 = vmatpush1.msra.mxu0 %v313
    %343 = vmatprep.subr.mxu0 0.0
    %344 = vmatpush1.msra.mxu0 %v314
    %345 = vmatprep.subr.mxu0 0.0
    %346 = vmatpush1.msra.mxu0 %v315
    %347 = vmatprep.subr.mxu0 0.0
    %348 = vmatpush1.msra.mxu0 %v316
    %349 = vmatprep.subr.mxu0 0.0
    %350 = vmatpush1.msra.mxu0 %v317
    %351 = vmatprep.subr.mxu0 0.0
    %352 = vmatpush1.msra.mxu0 %v318
    %353 = vmatprep.subr.mxu0 0.0
    %354 = vmatpush1.msra.mxu0 %v319
    %355 = vmatprep.subr.mxu0 0.0
    %356 = vmatpush1.msra.mxu0 %v320
    %357 = vmatprep.subr.mxu0 0.0
    %358 = vmatpush1.msra.mxu0 0.0
    %359 = vmatprep.subr.mxu0 0.0
    %360 = vmatpush1.msra.mxu0 0.0
    %361 = vmatprep.subr.mxu0 0.0
    %362 = vmatpush1.msra.mxu0 0.0
    %363 = vmatprep.subr.mxu0 0.0
    %364 = vmatpush1.msra.mxu0 0.0
    %365 = vmatprep.subr.mxu0 0.0
    %366 = vmatpush1.msra.mxu0 0.0
    %367 = vmatprep.subr.mxu0 0.0
    %368 = vmatpush1.msra.mxu0 0.0
    %369 = vmatprep.subr.mxu0 0.0
    %370 = vmatpush1.msra.mxu0 0.0
    %371 = vmatprep.subr.mxu0 0.0
    %372 = vmatpush1.msra.mxu0 0.0
    %373 = vmatprep.subr.mxu0 0.0
    %374 = vmatpush1.msra.mxu0 0.0
    %375 = vmatprep.subr.mxu0 0.0
    %376 = vmatpush1.msra.mxu0 0.0
    %377 = vmatprep.subr.mxu0 0.0
    %378 = vmatpush1.msra.mxu0 0.0
    %379 = vmatprep.subr.mxu0 0.0
    %380 = vmatpush1.msra.mxu0 0.0
    %381 = vmatprep.subr.mxu0 0.0
    %382 = vmatpush1.msra.mxu0 0.0
    %383 = vmatprep.subr.mxu0 0.0
    %384 = vmatpush1.msra.mxu0 0.0
    %385 = vmatprep.subr.mxu0 0.0
    %386 = vmatpush1.msra.mxu0 0.0
    %387 = vmatprep.subr.mxu0 0.0
    %388 = vmatpush1.msra.mxu0 0.0
    %389 = vmatprep.mubr.f32.mxu0 0.0
    %390 = vmatmul.mubr.f32.gmra.mrb[0].mxu0 %v304
    %v391 = vpop.f32.mrb[0].mxu0
    %v392 = vadd.f32 %v324, %v391
    %v393 = vpop.f32.mrb[0].mxu0
    %394 = vdwg.mxu0
    %395 = vst [vmem:[#allocation8] sm:$0xff] %v392
    // Predicated region
    $region34: #{mlp_forward.1} parent=1 // pred_check
      _
    $region35: #{mlp_forward.1} parent=1 // pred_check_branch
      %397 = sbr.rel (0) target = $region37
    $region36: #{mlp_forward.1} parent=1 // pred_region
      %s399 = ssub.s32 128, 128
      %400 = vsyncadd [#allocation4], %s399
      %s402 = sshll.u32 [#allocation8], 4
      %s403 = int_to_ptr.vmem [resolvable:$true] %s402
      %405 = dma.vmem_to_hbm [thread:$0]  %s403, 128, %s5, [#allocation4]
    $region37: #{mlp_forward.1} parent=1 // pred_fallthru
      _
    // Predicated region
    $region38: #{mlp_forward.1} parent=1 // pred_check
      _
    $region39: #{mlp_forward.1} parent=1 // pred_check_branch
      %407 = sbr.rel (0) target = $region41
    $region40: #{mlp_forward.1} parent=1 // pred_region
      %408 = dma.done [#allocation4], 128
    $region41: #{mlp_forward.1} parent=1 // pred_fallthru
      _
    %409 = vsyncpa [#allocation3], 1
    %410 = vsyncpa [#allocation6], 1
    %411 = vsyncpa [#allocation4], 1

</llo_original>
